<compile_context>
chip_gen: v5e
topology: v5e:2x2
jax: 0.10.0
libtpu: 0.0.40
codegen_flags: <defaults>
</compile_context>

<pallas_src>
import functools

import numpy as np
import jax
import jax.numpy as jnp
from jax import lax
from jax.experimental import pallas as pl
from jax.experimental.pallas import tpu as pltpu


def _round_up(x, m):
    return ((x + m - 1) // m) * m


def _length_regulator_kernel(
    xlen_ref,   # SMEM (B,) int32        -- scalar prefetch: per-batch frame counts
    x_ref,      # VMEM (1, C_pad, Tk)    -- xs with pitch fused at row C, zero rows above
    cume_ref,   # VMEM (1, 1, Tk) int32  -- exclusive duration prefix sum (lane-major)
    cumi_ref,   # VMEM (1, 1, Tk) int32  -- inclusive duration prefix sum (lane-major)
    out_ref,    # VMEM (1, C_pad, TN)    -- fused features+pitch output tile
    *,
    pad_value,
):
    b = pl.program_id(0)
    t = pl.program_id(1)
    TN = out_ref.shape[2]
    Tk = x_ref.shape[2]
    tile_start = t * TN
    xlen = xlen_ref[b]

    @pl.when(tile_start < xlen)
    def _compute():
        # Tile-local phone intervals: subtract tile_start from the tiny (1, Tk)
        # prefix-sum rows instead of adding it to a full (TN, Tk) iota.
        start = cume_ref[0] - tile_start                       # (1, Tk)
        end = cumi_ref[0] - tile_start                         # (1, Tk)
        fr = lax.broadcasted_iota(jnp.int32, (TN, Tk), 0)      # frame index on sublanes
        onehot = jnp.logical_and(fr >= start, fr < end).astype(x_ref.dtype)  # (TN, Tk)
        # One fused MXU pass expands channels + pitch together:
        #   out[c, j] = sum_i x[c, i] * onehot[j, i]   (contract both minor dims).
        # NOTE: default Mosaic f32 matmul precision reproduced the reference to
        # 1e-5 on TPU for this exact-copy (one-hot) contraction.
        res = lax.dot_general(
            x_ref[0], onehot,
            dimension_numbers=(((1,), (1,)), ((), ())),
            preferred_element_type=jnp.float32)                # (C_pad, TN)
        if pad_value != 0.0:
            lane = lax.broadcasted_iota(jnp.int32, (1, TN), 1)
            res = jnp.where(lane < (xlen - tile_start), res, jnp.float32(pad_value))
        out_ref[0] = res.astype(out_ref.dtype)

    @pl.when(tile_start >= xlen)
    def _pad_only():
        out_ref[...] = jnp.full(out_ref.shape, pad_value, out_ref.dtype)


def length_regulator(xs, notepitch, ds, pad_value=0.0, *,
                     max_frames=None, tile_frames=None, trim=True):
    """JAX/Pallas equivalent of LengthRegulator.forward.

    xs: (B, C, T_text), notepitch: (B, T_text), ds: (B, T_text) int.
    max_frames: optional static frame bound / bucket (avoids the host sync for T_max).
    tile_frames: optional frame-axis tile width override (rounded to 128).
    trim: slice padded outputs back to T_max (original semantics).
    """
    B, C, T_text = xs.shape
    ds = jnp.asarray(ds, jnp.int32)

    # PyTorch guard: if *all* durations are zero, fill them with ones.
    all_zero = jnp.sum(ds) == 0
    ds = jnp.where(all_zero, jnp.ones_like(ds), ds)

    # Duration prefix sums (tiny) computed once here, not per kernel tile.
    cum_incl = jnp.cumsum(ds, axis=1, dtype=jnp.int32)        # (B, T_text)
    cum_excl = cum_incl - ds
    x_lengths = cum_incl[:, -1].astype(jnp.int32)             # (B,)

    if max_frames is None:
        # TODO(synk): data-dependent output width forces one host sync here; pass
        # max_frames (a static bucket) to keep dispatch fully asynchronous.
        T_max = int(jax.device_get(jnp.max(x_lengths)))
    else:
        T_max = int(max_frames)
    T_max = max(T_max, 1)

    itemsize = jnp.dtype(xs.dtype).itemsize
    sublane = max(8, 32 // itemsize)          # 8 for f32, 16 for bf16
    C_pad = _round_up(C + 1, sublane)         # +1 pitch row, sublane aligned
    Tk = _round_up(T_text, 128)               # phone (K) axis, lane aligned

    # ---- frame-tile selection under a VMEM budget --------------------------
    def vmem_need(tn):
        x_blk = C_pad * Tk * itemsize
        cum_blk = 2 * 8 * Tk * 4                       # two lane-major i32 rows (8-sublane pad)
        out_blk = C_pad * tn * itemsize
        tmp = 3 * tn * Tk * 4 + C_pad * tn * 4         # iota / mask / one-hot + f32 result
        return 2 * (x_blk + cum_blk) + 2 * out_blk + tmp

    cap = _round_up(T_max, 128)
    if tile_frames is not None:
        TN = min(max(128, _round_up(int(tile_frames), 128)), cap)
    else:
        TN = 128
        for cand in (1024, 512, 256, 128):             # big lane-dense tiles when they fit
            c = min(cand, cap)
            if vmem_need(c) <= (20 << 20):
                TN = c
                break
    T_pad = _round_up(T_max, TN)
    num_tiles = T_pad // TN

    # ---- build padded, fused inputs -----------------------------------------
    xs_aug = jnp.zeros((B, C_pad, Tk), xs.dtype)
    xs_aug = xs_aug.at[:, :C, :T_text].set(xs)
    xs_aug = xs_aug.at[:, C, :T_text].set(notepitch.astype(xs.dtype))
    # Padded phones get cum_excl == cum_incl == 0 -> empty intervals, no output.
    cume = jnp.pad(cum_excl, ((0, 0), (0, Tk - T_text))).reshape(B, 1, Tk)
    cumi = jnp.pad(cum_incl, ((0, 0), (0, Tk - T_text))).reshape(B, 1, Tk)

    kernel = functools.partial(_length_regulator_kernel, pad_value=float(pad_value))

    vmem_limit = int(min(max(2 * vmem_need(TN) + (4 << 20), 32 << 20), 64 << 20))
    cost = pl.CostEstimate(
        flops=2 * B * C_pad * Tk * T_pad,
        transcendentals=0,
        bytes_accessed=(B * C_pad * Tk + B * C_pad * T_pad) * itemsize + 2 * B * Tk * 4,
    )

    # TODO(synk): for T_text >> TN, window the phone (K) axis per frame tile via
    # scalar-prefetched offsets to cut per-tile work from O(T_text*TN) to ~O(TN^2).
    out_full = pl.pallas_call(
        kernel,
        out_shape=jax.ShapeDtypeStruct((B, C_pad, T_pad), xs.dtype),
        grid_spec=pltpu.PrefetchScalarGridSpec(
            num_scalar_prefetch=1,
            grid=(B, num_tiles),
            in_specs=[
                pl.BlockSpec((1, C_pad, Tk), lambda b, t, xlen: (b, 0, 0)),
                pl.BlockSpec((1, 1, Tk), lambda b, t, xlen: (b, 0, 0)),
                pl.BlockSpec((1, 1, Tk), lambda b, t, xlen: (b, 0, 0)),
            ],
            out_specs=pl.BlockSpec((1, C_pad, TN), lambda b, t, xlen: (b, 0, t)),
        ),
        compiler_params=pltpu.CompilerParams(
            dimension_semantics=("parallel", "parallel"),
            vmem_limit_bytes=vmem_limit),
        cost_estimate=cost,
    )(x_lengths, xs_aug, cume, cumi)

    out = out_full[:, :C, :]
    # Pitch travels as channel row C of the fused output; cast back to the pitch
    # dtype (if xs is lower precision than notepitch, pitch passes through it).
    fp = out_full[:, C, :].astype(notepitch.dtype)
    if trim:
        out = out[:, :, :T_max]
        fp = fp[:, :T_max]
    return out, fp, x_lengths


def _reference_numpy(xs, notepitch, ds, pad_value=0.0, t_max=None):
    xs = np.asarray(xs, np.float32)
    notepitch = np.asarray(notepitch, np.float32)
    ds = np.asarray(ds, np.int64)
    if ds.sum() == 0:
        ds = np.ones_like(ds)
    B, C, T_text = xs.shape
    lengths = ds.sum(axis=1)
    if t_max is None:
        t_max = int(lengths.max())
    out = np.full((B, C, t_max), pad_value, np.float32)
    fp = np.full((B, t_max), pad_value, np.float32)
    for b in range(B):
        rep = np.repeat(xs[b].T, ds[b], axis=0)          # (L, C)
        n = min(rep.shape[0], t_max)
        out[b, :, :n] = rep[:n].T
        prep = np.repeat(notepitch[b], ds[b], axis=0)    # (L,)
        fp[b, :n] = prep[:n]
    return out, fp, lengths.astype(np.int32)


if __name__ == "__main__":
    key = jax.random.PRNGKey(0)
    k1, k2, k3 = jax.random.split(key, 3)

    B, C, T_text = 2, 6, 8   # C deliberately not a multiple of 8 to exercise channel padding
    xs = jax.random.normal(k1, (B, C, T_text), dtype=jnp.float32)
    notepitch = jax.random.uniform(k2, (B, T_text), dtype=jnp.float32) * 60.0 + 40.0
    ds = jax.random.randint(k3, (B, T_text), minval=0, maxval=5, dtype=jnp.int32)

    # 1) default path (data-dependent T_max, pad_value = 0)
    out, frame_pitch, x_lengths = length_regulator(xs, notepitch, ds)
    jax.block_until_ready((out, frame_pitch, x_lengths))

    ref_out, ref_fp, ref_len = _reference_numpy(np.asarray(xs), np.asarray(notepitch), np.asarray(ds))
    np.testing.assert_allclose(np.asarray(out), ref_out, rtol=1e-5, atol=1e-5)
    np.testing.assert_allclose(np.asarray(frame_pitch), ref_fp, rtol=1e-5, atol=1e-5)
    np.testing.assert_array_equal(np.asarray(x_lengths), ref_len)

    # 2) static frame bucket (no host sync) + nonzero pad value
    out2, fp2, _ = length_regulator(xs, notepitch, ds, pad_value=1.5, max_frames=48)
    jax.block_until_ready((out2, fp2))
    ref_out2, ref_fp2, _ = _reference_numpy(np.asarray(xs), np.asarray(notepitch),
                                            np.asarray(ds), pad_value=1.5, t_max=48)
    np.testing.assert_allclose(np.asarray(out2), ref_out2, rtol=1e-5, atol=1e-5)
    np.testing.assert_allclose(np.asarray(fp2), ref_fp2, rtol=1e-5, atol=1e-5)

    print("KERNEL_OK")
</pallas_src>

<mosaic_0001>
module attributes {stable_mosaic.version = 11 : i64} {
  func.func @_length_regulator_kernel(%arg0: i32, %arg1: i32, %arg2: memref<2xi32, #tpu.memory_space<smem>>, %arg3: memref<1x8x128xf32, #tpu.memory_space<vmem>>, %arg4: memref<1x1x128xi32, #tpu.memory_space<vmem>>, %arg5: memref<1x1x128xi32, #tpu.memory_space<vmem>>, %arg6: memref<1x8x128xf32, #tpu.memory_space<vmem>>) attributes {dimension_semantics = [#tpu.dimension_semantics<parallel>, #tpu.dimension_semantics<parallel>], iteration_bounds = array<i64: 2, 1>, scalar_prefetch = 1 : i64, scratch_operands = 0 : i64, tpu.core_type = #tpu.core_type<tc>, window_params = [{transform_indices = @transform_0, window_bounds = array<i64: 1, 8, 128>}, {transform_indices = @transform_1, window_bounds = array<i64: 1, 1, 128>}, {transform_indices = @transform_2, window_bounds = array<i64: 1, 1, 128>}, {transform_indices = @transform_3, window_bounds = array<i64: 1, 8, 128>}]} {
    %c128_i32 = arith.constant 128 : i32
    %0 = arith.muli %arg1, %c128_i32 : i32
    %1 = arith.index_cast %arg0 : i32 to index
    %2 = memref.load %arg2[%1] : memref<2xi32, #tpu.memory_space<smem>>
    %3 = arith.cmpi slt, %0, %2 : i32
    %4 = arith.extui %3 : i1 to i32
    %c0_i32 = arith.constant 0 : i32
    %5 = arith.cmpi ne, %4, %c0_i32 : i32
    scf.if %5 {
      %c0 = arith.constant 0 : index
      %c0_1 = arith.constant 0 : index
      %c0_2 = arith.constant 0 : index
      %9 = vector.load %arg4[%c0, %c0_1, %c0_2] : memref<1x1x128xi32, #tpu.memory_space<vmem>>, vector<1x1x128xi32>
      %10 = vector.shape_cast %9 : vector<1x1x128xi32> to vector<1x128xi32>
      %11 = vector.broadcast %0 : i32 to vector<1x128xi32>
      %12 = arith.subi %10, %11 : vector<1x128xi32>
      %c0_3 = arith.constant 0 : index
      %c0_4 = arith.constant 0 : index
      %c0_5 = arith.constant 0 : index
      %13 = vector.load %arg5[%c0_3, %c0_4, %c0_5] : memref<1x1x128xi32, #tpu.memory_space<vmem>>, vector<1x1x128xi32>
      %14 = vector.shape_cast %13 : vector<1x1x128xi32> to vector<1x128xi32>
      %15 = vector.broadcast %0 : i32 to vector<1x128xi32>
      %16 = arith.subi %14, %15 : vector<1x128xi32>
      %17 = tpu.iota {dimensions = array<i32: 0>} : vector<128x128xi32>
      %18 = vector.broadcast %12 : vector<1x128xi32> to vector<128x128xi32>
      %19 = arith.cmpi sge, %17, %18 : vector<128x128xi32>
      %20 = vector.broadcast %16 : vector<1x128xi32> to vector<128x128xi32>
      %21 = arith.cmpi slt, %17, %20 : vector<128x128xi32>
      %22 = arith.andi %19, %21 : vector<128x128xi1>
      %23 = arith.extui %22 : vector<128x128xi1> to vector<128x128xi32>
      %24 = arith.sitofp %23 : vector<128x128xi32> to vector<128x128xf32>
      %c0_6 = arith.constant 0 : index
      %c0_7 = arith.constant 0 : index
      %c0_8 = arith.constant 0 : index
      %25 = vector.load %arg3[%c0_6, %c0_7, %c0_8] : memref<1x8x128xf32, #tpu.memory_space<vmem>>, vector<1x8x128xf32>
      %26 = vector.shape_cast %25 : vector<1x8x128xf32> to vector<8x128xf32>
      %cst = arith.constant dense<0.000000e+00> : vector<8x128xf32>
      %27 = tpu.matmul %26, %24, %cst {dimension_numbers = #tpu.dot_dimension_numbers<[1], [1], [0], [0], [0, 0, 1, 0], [], []>} : vector<8x128xf32>, vector<128x128xf32>, vector<8x128xf32> -> vector<8x128xf32>
      %c0_9 = arith.constant 0 : index
      %c0_10 = arith.constant 0 : index
      %c0_11 = arith.constant 0 : index
      %28 = vector.load %arg6[%c0_9, %c0_10, %c0_11] : memref<1x8x128xf32, #tpu.memory_space<vmem>>, vector<1x8x128xf32>
      %29 = vector.shape_cast %28 : vector<1x8x128xf32> to vector<8x128xf32>
      %30 = vector.shape_cast %27 : vector<8x128xf32> to vector<1x8x128xf32>
      tpu.vector_store %arg6[%c0_9, %c0_10, %c0_11], %30 {strides = array<i32>} : memref<1x8x128xf32, #tpu.memory_space<vmem>>, vector<1x8x128xf32>,
    } else {
    }
    %6 = arith.cmpi sge, %0, %2 : i32
    %7 = arith.extui %6 : i1 to i32
    %c0_i32_0 = arith.constant 0 : i32
    %8 = arith.cmpi ne, %7, %c0_i32_0 : i32
    scf.if %8 {
      %cst = arith.constant 0.000000e+00 : f32
      %9 = vector.broadcast %cst : f32 to vector<1x8x128xf32>
      %c0 = arith.constant 0 : index
      %c0_1 = arith.constant 0 : index
      %c0_2 = arith.constant 0 : index
      %10 = vector.load %arg6[%c0, %c0_1, %c0_2] : memref<1x8x128xf32, #tpu.memory_space<vmem>>, vector<1x8x128xf32>
      tpu.vector_store %arg6[%c0, %c0_1, %c0_2], %9 {strides = array<i32>} : memref<1x8x128xf32, #tpu.memory_space<vmem>>, vector<1x8x128xf32>,
    } else {
    }
    return
  }
  func.func @transform_0(%arg0: i32, %arg1: i32, %arg2: memref<2xi32, #tpu.memory_space<smem>>) -> (i32, i32, i32) {
    %c0_i32 = arith.constant 0 : i32
    %c0_i32_0 = arith.constant 0 : i32
    %c0_i32_1 = arith.constant 0 : i32
    return %arg0, %c0_i32, %c0_i32_0 : i32, i32, i32
  }
  func.func @transform_1(%arg0: i32, %arg1: i32, %arg2: memref<2xi32, #tpu.memory_space<smem>>) -> (i32, i32, i32) {
    %c0_i32 = arith.constant 0 : i32
    %c0_i32_0 = arith.constant 0 : i32
    %c0_i32_1 = arith.constant 0 : i32
    return %arg0, %c0_i32, %c0_i32_0 : i32, i32, i32
  }
  func.func @transform_2(%arg0: i32, %arg1: i32, %arg2: memref<2xi32, #tpu.memory_space<smem>>) -> (i32, i32, i32) {
    %c0_i32 = arith.constant 0 : i32
    %c0_i32_0 = arith.constant 0 : i32
    %c0_i32_1 = arith.constant 0 : i32
    return %arg0, %c0_i32, %c0_i32_0 : i32, i32, i32
  }
  func.func @transform_3(%arg0: i32, %arg1: i32, %arg2: memref<2xi32, #tpu.memory_space<smem>>) -> (i32, i32, i32) {
    %c0_i32 = arith.constant 0 : i32
    %c0_i32_0 = arith.constant 0 : i32
    return %arg0, %c0_i32, %arg1 : i32, i32, i32
  }
}

</mosaic_0001>

<llo_original>
// kernel: tpu_custom_call.1
$region0: #{tpu_custom_call.1}
  #allocation0 [shape = 'u32[]', space=smem, size = 0x4, offset = 0x4, fixed_abs, tag = 'smem constant byte address 0x4 - core index']
  #allocation1 [shape = 'u32[72,128]{1,0:T(1,128)}', space=vmem, size = 0x9000, scoped, tag = 'internal scratch']
  #allocation2 [shape = 's32[1]{0}', space=sflag, size = 0x4, scoped, tag = 'scoped memory for tpu_custom_call.1']
  #allocation3 [shape = 'u8[512]{0}', space=smem, size = 0x200, scoped, tag = 'prefetched SMEM operand 0']
  %s0 = inlined_call_operand.hbm [shape: s32[2], index: 0, kind: input, shape index: {}]
  %s1 = inlined_call_operand.hbm [shape: f32[2,8,128], index: 1, kind: input, shape index: {}]
  %s2 = inlined_call_operand.hbm [shape: s32[2,1,128], index: 2, kind: input, shape index: {}]
  %s3 = inlined_call_operand.vmem [shape: s32[2,1,128], index: 3, kind: input, shape index: {}]
  %s4 = inlined_call_operand.hbm [shape: f32[2,8,128], index: 4, kind: output, shape index: {}]
  %s5 = sld [smem:[#allocation0]]
  $region61: #{tpu_custom_call.1} parent=0
    _
  %s7 = ssub.s32 1, %s5
  %s8 = scalar_select 0, %s7, %s5
  %s10 = sshll.u32 %s0, 4
  %s11 = int_to_ptr.hbm [resolvable:$true] %s10
  %13 = dma.hbm_to_smem %s11, 16, [#allocation3], [#allocation2]
  %15 = dma.done [#allocation2], 16
  %16 = sfence
  $region1: #{tpu_custom_call.1} parent=0
    #allocation4 [shape = 'u8[8192]{0}', space=vmem, size = 0x2000, scoped, tag = 'input window, operand 1']
    #allocation5 [shape = 's32[2]{0}', space=sflag, size = 0x8, scoped, tag = 'scoped memory for tpu_custom_call.1']
    #allocation6 [shape = 's32[2]{0}', space=sflag, size = 0x8, scoped, tag = 'scoped memory for tpu_custom_call.1']
    #allocation7 [shape = 'u8[1024]{0}', space=vmem, size = 0x400, scoped, tag = 'input window, operand 2']
    #allocation8 [shape = 's32[2]{0}', space=sflag, size = 0x8, scoped, tag = 'scoped memory for tpu_custom_call.1']
    #allocation9 [shape = 'u8[8192]{0}', space=vmem, size = 0x2000, scoped, tag = 'output window, operand 0']
    %17 = vsyncpa [#allocation5], 0
    %s18 = scalar_lea.sflag [#allocation5], 1
    %19 = vsyncpa %s18, 0
    %20 = vsyncpa [#allocation8], 0
    %s21 = scalar_lea.sflag [#allocation8], 1
    %22 = vsyncpa %s21, 0
    %23 = vsyncpa [#allocation6], 0
    %s24 = scalar_lea.sflag [#allocation6], 1
    %25 = vsyncpa %s24, 0
    loop: start=0, step=1, limit=4
    $region2: #{tpu_custom_call.1} parent=1 // loop_pre_header
      _
    $region3: #{tpu_custom_call.1} parent=1 // loop_header
      %s27 = sphi 0, %s31
      %p28 = scmp.ge.s32.totalorder %s27, 4
      %s34 = sphi 0, %s46
      %s35 = sphi 0, %s42
      %s36 = sphi 0, %s34
      %s37 = sphi 0, %s35
      %s38 = sphi 0, %s36
      %s39 = sphi 0, %s37
      %s49 = sphi 0, %s51
      %s52 = sphi 0, %s49
      %s53 = sphi 0, %s52
      %s69 = sphi 0, %s53
      %s75 = sphi 0, %s77
      %s78 = sphi 0, %s75
      %s79 = sphi 0, %s78
      %s95 = sphi 0, %s79
      %s101 = sphi 0, %s103
      %s104 = sphi 0, %s101
      %s105 = sphi 0, %s104
      %s121 = sphi 0, %s105
      %s129 = sphi 0, %s131
      %s132 = sphi 0, %s129
      %s133 = sphi 0, %s132
      %s149 = sphi 0, %s133
    $region4: #{tpu_custom_call.1} parent=1 // loop_header_branch
      %30 = sbr.rel (%p28) target = $region8
    $region5: #{tpu_custom_call.1} parent=1 // loop_body
      %s32 = ssub.s32 %s27, 1
      %s33 = ssub.s32 %s27, 2
      %s40 = sadd.s32 1, %s35
      %p41 = scmp.ge.s32.totalorder %s40, 1
      %s42 = scalar_select %p41, 0, %s40
      %s43 = sadd.s32 1, %s34
      %s44 = scalar_select %p41, %s43, %s34
      %p45 = scmp.ge.s32.totalorder %s44, 2
      %s46 = scalar_select %p45, 0, %s44
      %s47 = ssub.s32 %s34, %s46
      %p48 = scmp.eq.s32.totalorder %s47, 0
      %s50 = sadd.s32 %s49, 1
      %s51 = scalar_select %p48, %s49, %s50
      %p54 = pneg %p48
      %p55 = scmp.eq.s32.totalorder %s27, 1
      %p56 = por %p54, %p55
      %p57 = scmp.ne.s32.totalorder %s49, %s52
      %p58 = scmp.eq.s32.totalorder %s27, 0
      %p59 = por %p57, %p58
      %p60 = scmp.ne.s32.totalorder %s49, %s52
      %p61 = scmp.eq.s32.totalorder %s32, 1
      %p62 = por %p60, %p61
      %p63 = scmp.ne.s32.totalorder %s52, %s53
      %p64 = scmp.eq.s32.totalorder %s32, 0
      %p65 = por %p63, %p64
      %p66 = scmp.ne.s32.totalorder %s52, %s53
      %p67 = scmp.eq.s32.totalorder %s33, 1
      %p68 = por %p66, %p67
      %p70 = scmp.ne.s32.totalorder %s53, %s69
      %p71 = scmp.eq.s32.totalorder %s33, 0
      %p72 = por %p70, %p71
      %s73 = ssub.s32 %s34, %s46
      %p74 = scmp.eq.s32.totalorder %s73, 0
      %s76 = sadd.s32 %s75, 1
      %s77 = scalar_select %p74, %s75, %s76
      %p80 = pneg %p74
      %p81 = scmp.eq.s32.totalorder %s27, 1
      %p82 = por %p80, %p81
      %p83 = scmp.ne.s32.totalorder %s75, %s78
      %p84 = scmp.eq.s32.totalorder %s27, 0
      %p85 = por %p83, %p84
      %p86 = scmp.ne.s32.totalorder %s75, %s78
      %p87 = scmp.eq.s32.totalorder %s32, 1
      %p88 = por %p86, %p87
      %p89 = scmp.ne.s32.totalorder %s78, %s79
      %p90 = scmp.eq.s32.totalorder %s32, 0
      %p91 = por %p89, %p90
      %p92 = scmp.ne.s32.totalorder %s78, %s79
      %p93 = scmp.eq.s32.totalorder %s33, 1
      %p94 = por %p92, %p93
      %p96 = scmp.ne.s32.totalorder %s79, %s95
      %p97 = scmp.eq.s32.totalorder %s33, 0
      %p98 = por %p96, %p97
      %s99 = ssub.s32 %s34, %s46
      %p100 = scmp.eq.s32.totalorder %s99, 0
      %s102 = sadd.s32 %s101, 1
      %s103 = scalar_select %p100, %s101, %s102
      %p106 = pneg %p100
      %p107 = scmp.eq.s32.totalorder %s27, 1
      %p108 = por %p106, %p107
      %p109 = scmp.ne.s32.totalorder %s101, %s104
      %p110 = scmp.eq.s32.totalorder %s27, 0
      %p111 = por %p109, %p110
      %p112 = scmp.ne.s32.totalorder %s101, %s104
      %p113 = scmp.eq.s32.totalorder %s32, 1
      %p114 = por %p112, %p113
      %p115 = scmp.ne.s32.totalorder %s104, %s105
      %p116 = scmp.eq.s32.totalorder %s32, 0
      %p117 = por %p115, %p116
      %p118 = scmp.ne.s32.totalorder %s104, %s105
      %p119 = scmp.eq.s32.totalorder %s33, 1
      %p120 = por %p118, %p119
      %p122 = scmp.ne.s32.totalorder %s105, %s121
      %p123 = scmp.eq.s32.totalorder %s33, 0
      %p124 = por %p122, %p123
      %s125 = ssub.s32 %s34, %s46
      %s126 = ssub.s32 %s35, %s42
      %s127 = sor.u32 %s125, %s126
      %p128 = scmp.eq.s32.totalorder %s127, 0
      %s130 = sadd.s32 %s129, 1
      %s131 = scalar_select %p128, %s129, %s130
      %p134 = pneg %p128
      %p135 = scmp.eq.s32.totalorder %s27, 1
      %p136 = por %p134, %p135
      %p137 = scmp.ne.s32.totalorder %s129, %s132
      %p138 = scmp.eq.s32.totalorder %s27, 0
      %p139 = por %p137, %p138
      %p140 = scmp.ne.s32.totalorder %s129, %s132
      %p141 = scmp.eq.s32.totalorder %s32, 1
      %p142 = por %p140, %p141
      %p143 = scmp.ne.s32.totalorder %s132, %s133
      %p144 = scmp.eq.s32.totalorder %s32, 0
      %p145 = por %p143, %p144
      %p146 = scmp.ne.s32.totalorder %s132, %s133
      %p147 = scmp.eq.s32.totalorder %s33, 1
      %p148 = por %p146, %p147
      %p150 = scmp.ne.s32.totalorder %s133, %s149
      %p151 = scmp.eq.s32.totalorder %s33, 0
      %p152 = por %p150, %p151
      %p153 = scmp.le.s32.totalorder 1, %s27
      %p154 = scmp.lt.s32.totalorder %s27, 3
      %p155 = pnand %p153, %p154
      %p156 = pneg %p155
      // Predicated region
      $region9: #{tpu_custom_call.1} parent=5 // pred_check
        _
      $region10: #{tpu_custom_call.1} parent=5 // pred_check_branch
        %158 = sbr.rel (%p155) target = $region12
      $region11: #{tpu_custom_call.1} parent=5 // pred_region
        %s159 = ssub.s32 %s27, 1
      $region12: #{tpu_custom_call.1} parent=5 // pred_fallthru
        _
      %p160 = scmp.lt.s32.totalorder %s27, 2
      // Predicated region
      $region13: #{tpu_custom_call.1} parent=5 // pred_check
        %p161 = pneg %p160
      $region14: #{tpu_custom_call.1} parent=5 // pred_check_branch
        %163 = sbr.rel (%p161) target = $region16
      $region15: #{tpu_custom_call.1} parent=5 // pred_region
        // Predicated region
        $region17: #{tpu_custom_call.1} parent=15 // pred_check
          %p164 = pneg %p59
        $region18: #{tpu_custom_call.1} parent=15 // pred_check_branch
          %166 = sbr.rel (%p164) target = $region20
        $region19: #{tpu_custom_call.1} parent=15 // pred_region
          %s167 = sand.u32 %s49, 1
          %s168 = scalar_lea.sflag [#allocation5], %s167
          %s169 = sand.u32 %s49, 1
          %s170 = smul.addr %s169, 8
          %s171 = scalar_lea.vmem [#allocation4], %s170
          %173 = vsyncadd %s168, 0
          %s174 = smul.addr %s34, 8
          %s175 = scalar_lea.hbm %s1, %s174
          %s177 = sshll.u32 %s175, 4
          %s178 = int_to_ptr.hbm [resolvable:$true] %s177
          %s179 = sshll.u32 %s171, 4
          %s180 = int_to_ptr.vmem [resolvable:$true] %s179
          %182 = dma.hbm_to_vmem [thread:$0]  %s178, 128, %s180, %s168
        $region20: #{tpu_custom_call.1} parent=15 // pred_fallthru
          _
        // Predicated region
        $region21: #{tpu_custom_call.1} parent=15 // pred_check
          %p183 = pneg %p85
        $region22: #{tpu_custom_call.1} parent=15 // pred_check_branch
          %185 = sbr.rel (%p183) target = $region24
        $region23: #{tpu_custom_call.1} parent=15 // pred_region
          %s186 = sand.u32 %s75, 1
          %s187 = scalar_lea.sflag [#allocation8], %s186
          %s188 = sand.u32 %s75, 1
          %s189 = scalar_lea.vmem [#allocation7], %s188
          %191 = vsyncadd %s187, 0
          %s192 = scalar_lea.hbm %s2, %s34
          %s194 = sshll.u32 %s192, 4
          %s195 = int_to_ptr.hbm [resolvable:$true] %s194
          %s196 = sshll.u32 %s189, 4
          %s197 = int_to_ptr.vmem [resolvable:$true] %s196
          %199 = dma.hbm_to_vmem [thread:$0]  %s195, 16, %s197, %s187
        $region24: #{tpu_custom_call.1} parent=15 // pred_fallthru
          _
        // Predicated region
        $region25: #{tpu_custom_call.1} parent=15 // pred_check
          %p200 = pneg %p111
        $region26: #{tpu_custom_call.1} parent=15 // pred_check_branch
          %202 = sbr.rel (%p200) target = $region28
        $region27: #{tpu_custom_call.1} parent=15 // pred_region
          %p203 = scmp.lt.s32.totalorder %s34, 1
          %s204 = scalar_select %p203, %s34, 1
          %s205 = scalar_lea.vmem %s3, %s204
        $region28: #{tpu_custom_call.1} parent=15 // pred_fallthru
          _
      $region16: #{tpu_custom_call.1} parent=5 // pred_fallthru
        _
      %p206 = scmp.le.s32.totalorder 1, %s27
      %p207 = scmp.lt.s32.totalorder %s27, 3
      %p208 = pnand %p206, %p207
      %p209 = pneg %p208
      // Predicated region
      $region29: #{tpu_custom_call.1} parent=5 // pred_check
        _
      $region30: #{tpu_custom_call.1} parent=5 // pred_check_branch
        %211 = sbr.rel (%p208) target = $region32
      $region31: #{tpu_custom_call.1} parent=5 // pred_region
        %s212 = ssub.s32 %s27, 1
        %s213 = sand.u32 %s52, 1
        %s214 = scalar_lea.sflag [#allocation5], %s213
        %s215 = sand.u32 %s52, 1
        %s216 = smul.addr %s215, 8
        %s217 = scalar_lea.vmem [#allocation4], %s216
        // Predicated region
        $region33: #{tpu_custom_call.1} parent=31 // pred_check
          %p218 = pneg %p65
        $region34: #{tpu_custom_call.1} parent=31 // pred_check_branch
          %220 = sbr.rel (%p218) target = $region36
        $region35: #{tpu_custom_call.1} parent=31 // pred_region
          %222 = dma.done %s214, 128
        $region36: #{tpu_custom_call.1} parent=31 // pred_fallthru
          _
        %s223 = sand.u32 %s78, 1
        %s224 = scalar_lea.sflag [#allocation8], %s223
        %s225 = sand.u32 %s78, 1
        %s226 = scalar_lea.vmem [#allocation7], %s225
        // Predicated region
        $region37: #{tpu_custom_call.1} parent=31 // pred_check
          %p227 = pneg %p91
        $region38: #{tpu_custom_call.1} parent=31 // pred_check_branch
          %229 = sbr.rel (%p227) target = $region40
        $region39: #{tpu_custom_call.1} parent=31 // pred_region
          %231 = dma.done %s224, 16
        $region40: #{tpu_custom_call.1} parent=31 // pred_fallthru
          _
        %s232 = sand.u32 %s52, 1
        %s233 = scalar_lea.sflag [#allocation5], %s232
        %s234 = sand.u32 %s52, 1
        %s235 = smul.addr %s234, 8
        %s236 = scalar_lea.vmem [#allocation4], %s235
        %p237 = pneg %p65
        %p238 = pneg %p62
        %s239 = sand.u32 %s78, 1
        %s240 = scalar_lea.sflag [#allocation8], %s239
        %s241 = sand.u32 %s78, 1
        %s242 = scalar_lea.vmem [#allocation7], %s241
        %p243 = pneg %p91
        %p244 = pneg %p88
        %p245 = scmp.lt.s32.totalorder %s36, 1
        %s246 = scalar_select %p245, %s36, 1
        %s247 = scalar_lea.vmem %s3, %s246
        %p248 = pneg %p117
        %p249 = pneg %p114
        %p250 = pneg %p145
        %p251 = pneg %p142
        %s252 = sand.u32 %s132, 1
        %s253 = scalar_lea.sflag [#allocation6], %s252
        %s254 = sand.u32 %s132, 1
        %s255 = smul.addr %s254, 8
        %s256 = scalar_lea.vmem [#allocation9], %s255
        %p257 = scmp.lt.s32.totalorder %s36, 1
        %s258 = scalar_select %p257, %s36, 1
        %s259 = scalar_lea.vmem %s3, %s258
        %s260 = smul.u32 %s37, 128
        %s261 = sld [smem:[#allocation3 + %s36]]
        %p262 = scmp.lt.s32.totalorder %s260, %s261
        // Predicated region
        $region41: #{tpu_custom_call.1} parent=31 // pred_check
          %p263 = pneg %p262
        $region42: #{tpu_custom_call.1} parent=31 // pred_check_branch
          %265 = sbr.rel (%p263) target = $region44
        $region43: #{tpu_custom_call.1} parent=31 // pred_region
          %v266 = vld [vmem:[%s226] sm:$0x1]
          %v267 = vstv %s260
          %v268 = vsub.s32 %v266, %v267
          %v269 = vld [vmem:[%s259] sm:$0x1]
          %v270 = vsub.s32 %v269, %v267
          %v271 = vlaneseq
          %v272 = vshrl.u32 %v271, 7
          %v273 = vadd.s32 %v272, 8
          %v274 = vadd.s32 %v272, 16
          %v275 = vadd.s32 %v272, 24
          %v276 = vadd.s32 %v272, 32
          %v277 = vadd.s32 %v272, 40
          %v278 = vadd.s32 %v272, 48
          %v279 = vadd.s32 %v272, 56
          %v280 = vadd.s32 %v272, 64
          %v281 = vadd.s32 %v272, 72
          %v282 = vadd.s32 %v272, 80
          %v283 = vadd.s32 %v272, 88
          %v284 = vadd.s32 %v272, 96
          %v285 = vadd.s32 %v272, 104
          %v286 = vadd.s32 %v272, 112
          %v287 = vadd.s32 %v272, 120
          %v288 = vperm.slane %v268, 0
          %vm289 = vcmp.ge.s32.totalorder %v272, %v288
          %vm290 = vcmp.ge.s32.totalorder %v273, %v288
          %vm291 = vcmp.ge.s32.totalorder %v274, %v288
          %vm292 = vcmp.ge.s32.totalorder %v275, %v288
          %vm293 = vcmp.ge.s32.totalorder %v276, %v288
          %vm294 = vcmp.ge.s32.totalorder %v277, %v288
          %vm295 = vcmp.ge.s32.totalorder %v278, %v288
          %vm296 = vcmp.ge.s32.totalorder %v279, %v288
          %vm297 = vcmp.ge.s32.totalorder %v280, %v288
          %vm298 = vcmp.ge.s32.totalorder %v281, %v288
          %vm299 = vcmp.ge.s32.totalorder %v282, %v288
          %vm300 = vcmp.ge.s32.totalorder %v283, %v288
          %vm301 = vcmp.ge.s32.totalorder %v284, %v288
          %vm302 = vcmp.ge.s32.totalorder %v285, %v288
          %vm303 = vcmp.ge.s32.totalorder %v286, %v288
          %vm304 = vcmp.ge.s32.totalorder %v287, %v288
          %v305 = vperm.slane %v270, 0
          %vm306 = vcmp.lt.s32.totalorder %v272, %v305
          %vm307 = vcmp.lt.s32.totalorder %v273, %v305
          %vm308 = vcmp.lt.s32.totalorder %v274, %v305
          %vm309 = vcmp.lt.s32.totalorder %v275, %v305
          %vm310 = vcmp.lt.s32.totalorder %v276, %v305
          %vm311 = vcmp.lt.s32.totalorder %v277, %v305
          %vm312 = vcmp.lt.s32.totalorder %v278, %v305
          %vm313 = vcmp.lt.s32.totalorder %v279, %v305
          %vm314 = vcmp.lt.s32.totalorder %v280, %v305
          %vm315 = vcmp.lt.s32.totalorder %v281, %v305
          %vm316 = vcmp.lt.s32.totalorder %v282, %v305
          %vm317 = vcmp.lt.s32.totalorder %v283, %v305
          %vm318 = vcmp.lt.s32.totalorder %v284, %v305
          %vm319 = vcmp.lt.s32.totalorder %v285, %v305
          %vm320 = vcmp.lt.s32.totalorder %v286, %v305
          %vm321 = vcmp.lt.s32.totalorder %v287, %v305
          %vm322 = vmand %vm289, %vm306
          %vm323 = vmand %vm290, %vm307
          %vm324 = vmand %vm291, %vm308
          %vm325 = vmand %vm292, %vm309
          %vm326 = vmand %vm293, %vm310
          %vm327 = vmand %vm294, %vm311
          %vm328 = vmand %vm295, %vm312
          %vm329 = vmand %vm296, %vm313
          %vm330 = vmand %vm297, %vm314
          %vm331 = vmand %vm298, %vm315
          %vm332 = vmand %vm299, %vm316
          %vm333 = vmand %vm300, %vm317
          %vm334 = vmand %vm301, %vm318
          %vm335 = vmand %vm302, %vm319
          %vm336 = vmand %vm303, %vm320
          %vm337 = vmand %vm304, %vm321
          %v338 = vsel %vm322, 1, 0
          %v339 = vsel %vm323, 1, 0
          %v340 = vsel %vm324, 1, 0
          %v341 = vsel %vm325, 1, 0
          %v342 = vsel %vm326, 1, 0
          %v343 = vsel %vm327, 1, 0
          %v344 = vsel %vm328, 1, 0
          %v345 = vsel %vm329, 1, 0
          %v346 = vsel %vm330, 1, 0
          %v347 = vsel %vm331, 1, 0
          %v348 = vsel %vm332, 1, 0
          %v349 = vsel %vm333, 1, 0
          %v350 = vsel %vm334, 1, 0
          %v351 = vsel %vm335, 1, 0
          %v352 = vsel %vm336, 1, 0
          %v353 = vsel %vm337, 1, 0
          %v354 = vcvt.s32.f32 %v338
          %v355 = vcvt.s32.f32 %v339
          %v356 = vcvt.s32.f32 %v340
          %v357 = vcvt.s32.f32 %v341
          %v358 = vcvt.s32.f32 %v342
          %v359 = vcvt.s32.f32 %v343
          %v360 = vcvt.s32.f32 %v344
          %v361 = vcvt.s32.f32 %v345
          %v362 = vcvt.s32.f32 %v346
          %v363 = vcvt.s32.f32 %v347
          %v364 = vcvt.s32.f32 %v348
          %v365 = vcvt.s32.f32 %v349
          %v366 = vcvt.s32.f32 %v350
          %v367 = vcvt.s32.f32 %v351
          %v368 = vcvt.s32.f32 %v352
          %v369 = vcvt.s32.f32 %v353
          %v370 = vld [vmem:[%s217] sm:$0xff]
          %371 = vmatpush.xpose.msra.mxu0 %v369
          %372 = vmatpush.xpose.msra.mxu0 %v368
          %373 = vmatpush.xpose.msra.mxu0 %v367
          %374 = vmatpush.xpose.msra.mxu0 %v366
          %375 = vmatpush.xpose.msra.mxu0 %v365
          %376 = vmatpush.xpose.msra.mxu0 %v364
          %377 = vmatpush.xpose.msra.mxu0 %v363
          %378 = vmatpush.xpose.msra.mxu0 %v362
          %379 = vmatpush.xpose.msra.mxu0 %v361
          %380 = vmatpush.xpose.msra.mxu0 %v360
          %381 = vmatpush.xpose.msra.mxu0 %v359
          %382 = vmatpush.xpose.msra.mxu0 %v358
          %383 = vmatpush.xpose.msra.mxu0 %v357
          %384 = vmatpush.xpose.msra.mxu0 %v356
          %385 = vmatpush.xpose.msra.mxu0 %v355
          %386 = vmatpush.xpose.msra.mxu0 %v354
          %387 = vmatmul.f32.gmra.mxu0 %v370
          %v388 = vpop.f32.mrf.mxu0
          %v389 = vadd.f32 0.0, %v388
          %390 = vdwg.mxu0
          %391 = vst [vmem:[%s256] sm:$0xff] %v389
        $region44: #{tpu_custom_call.1} parent=31 // pred_fallthru
          _
        %p392 = scmp.ge.s32.totalorder %s260, %s261
        // Predicated region
        $region45: #{tpu_custom_call.1} parent=31 // pred_check
          %p393 = pneg %p392
        $region46: #{tpu_custom_call.1} parent=31 // pred_check_branch
          %395 = sbr.rel (%p393) target = $region48
        $region47: #{tpu_custom_call.1} parent=31 // pred_region
          %396 = vst [vmem:[%s256] sm:$0xff] 0.0
        $region48: #{tpu_custom_call.1} parent=31 // pred_fallthru
          _
        %s397 = sand.u32 %s132, 1
        %s398 = scalar_lea.sflag [#allocation6], %s397
        %s399 = sand.u32 %s132, 1
        %s400 = smul.addr %s399, 8
        %s401 = scalar_lea.vmem [#allocation9], %s400
        // Predicated region
        $region49: #{tpu_custom_call.1} parent=31 // pred_check
          %p402 = pneg %p142
        $region50: #{tpu_custom_call.1} parent=31 // pred_check_branch
          %404 = sbr.rel (%p402) target = $region52
        $region51: #{tpu_custom_call.1} parent=31 // pred_region
          %406 = vsyncadd %s398, 0
          %s407 = sadd.s32 %s37, %s36
          %s408 = smul.addr %s407, 8
          %s409 = scalar_lea.hbm %s4, %s408
          %s411 = sshll.u32 %s401, 4
          %s412 = int_to_ptr.vmem [resolvable:$true] %s411
          %s413 = sshll.u32 %s409, 4
          %s414 = int_to_ptr.hbm [resolvable:$true] %s413
          %416 = dma.vmem_to_hbm [thread:$0]  %s412, 128, %s414, %s398
        $region52: #{tpu_custom_call.1} parent=31 // pred_fallthru
          _
      $region32: #{tpu_custom_call.1} parent=5 // pred_fallthru
        _
      %p417 = scmp.le.s32.totalorder 2, %s27
      // Predicated region
      $region53: #{tpu_custom_call.1} parent=5 // pred_check
        %p418 = pneg %p417
      $region54: #{tpu_custom_call.1} parent=5 // pred_check_branch
        %420 = sbr.rel (%p418) target = $region56
      $region55: #{tpu_custom_call.1} parent=5 // pred_region
        %s421 = ssub.s32 %s27, 2
        // Predicated region
        $region57: #{tpu_custom_call.1} parent=55 // pred_check
          %p422 = pneg %p148
        $region58: #{tpu_custom_call.1} parent=55 // pred_check_branch
          %424 = sbr.rel (%p422) target = $region60
        $region59: #{tpu_custom_call.1} parent=55 // pred_region
          %s425 = sand.u32 %s133, 1
          %s426 = scalar_lea.sflag [#allocation6], %s425
          %s427 = sand.u32 %s133, 1
          %s428 = smul.addr %s427, 8
          %s429 = scalar_lea.vmem [#allocation9], %s428
          %431 = dma.done %s426, 128
        $region60: #{tpu_custom_call.1} parent=55 // pred_fallthru
          _
      $region56: #{tpu_custom_call.1} parent=5 // pred_fallthru
        _
    $region6: #{tpu_custom_call.1} parent=1 // loop_footer
      %s31 = sadd.s32 1, %s27
    $region7: #{tpu_custom_call.1} parent=1 // loop_footer_branch
      %26 = sbr.rel target = $region3
    $region8: #{tpu_custom_call.1} parent=1 // loop_exit
      _
    %432 = vsyncpa [#allocation5], 1
    %s433 = scalar_lea.sflag [#allocation5], 1
    %434 = vsyncpa %s433, 1
    %435 = vsyncpa [#allocation8], 1
    %s436 = scalar_lea.sflag [#allocation8], 1
    %437 = vsyncpa %s436, 1
    %438 = vsyncpa [#allocation6], 1
    %s439 = scalar_lea.sflag [#allocation6], 1
    %440 = vsyncpa %s439, 1

</llo_original>
